<compile_context>
chip_gen: v7x
topology: tpu7x:2x2x1
jax: 0.10.0
libtpu: 0.0.40
codegen_flags: <defaults>
</compile_context>

<pallas_src>
import functools
import math

import jax
import jax.numpy as jnp
from jax.experimental import pallas as pl
from jax.experimental.pallas import tpu as pltpu


_LANES = 512   # slab width: large multiple of 128 -> long unmasked vector stores


# --------------------------------------------------------------------------- #
# Kernel bodies
# --------------------------------------------------------------------------- #
def _kl_core(x_raw, y_raw, *, w, eps):
    """Shared elementwise math, computed in f32 (stable softplus formulation)."""
    x = x_raw.astype(jnp.float32)
    y = jnp.clip(y_raw.astype(jnp.float32), eps, 1.0 - eps)
    z = w * x
    e = jnp.exp(-jnp.abs(z))                              # exp(-|z|) in (0, 1]
    sp_neg = jnp.log(1.0 + e) + jnp.maximum(-z, 0.0)      # softplus(-z) = -log sigmoid(z)
    sp_pos = sp_neg + z                                   # softplus(z)  = -log(1 - sigmoid(z))
    log_eps = math.log(eps)
    log_s = jnp.maximum(-sp_neg, log_eps)                 # log(clip(sigmoid(z), eps, .))
    log_1ms = jnp.maximum(-sp_pos, log_eps)               # log(clip(1 - sigmoid(z), eps, .))
    term1 = y * (jnp.log(y) - log_s)
    # Match torch.where(y < 1, ..., 0): masks the 0*(-inf) branch when y == 1.
    term2 = jnp.where(y < 1.0, (1.0 - y) * (jnp.log(1.0 - y) - log_1ms), 0.0)
    return term1 + term2, y, z, e


def _binary_kl_full_kernel(x_ref, y_ref, kl_ref, grad_ref, hess_ref, *, w, eps):
    kl, y, z, e = _kl_core(x_ref[...], y_ref[...], w=w, eps=eps)
    inv = 1.0 / (1.0 + e)                                 # one reciprocal, reused below
    s = jnp.clip(jnp.where(z >= 0.0, 1.0, e) * inv, eps, 1.0 - eps)
    kl_ref[...] = kl.astype(kl_ref.dtype)
    grad_ref[...] = (w * (s - y)).astype(grad_ref.dtype)
    # s*(1-s) == e / (1+e)^2 for either sign of z; avoids forming 1-s.
    hess_ref[...] = ((w * w) * (e * inv * inv)).astype(hess_ref.dtype)


def _binary_kl_loss_kernel(x_ref, y_ref, kl_ref, *, w, eps):
    kl, _, _, _ = _kl_core(x_ref[...], y_ref[...], w=w, eps=eps)
    kl_ref[...] = kl.astype(kl_ref.dtype)


# --------------------------------------------------------------------------- #
# Tiling / chip tuning
# --------------------------------------------------------------------------- #
def _device_tuning():
    """(max rows per tile, vmem limit bytes), based on the chip's VMEM size."""
    try:
        vmem_cap = pltpu.get_tpu_info().vmem_capacity_bytes
    except Exception:                         # unknown chip / interpret mode
        vmem_cap = 64 << 20                   # assume the small-VMEM (v7x) case
    if vmem_cap >= (100 << 20):               # v5e / v6e: 128 MiB VMEM per TC
        return 2048, 96 << 20
    return 1024, 44 << 20                     # v7x: 64 MiB VMEM, keep headroom


def _pick_tm(rows, tm_max):
    """Rows per block: multiple of 16 (f32 & bf16 tiling); >=2 grid steps when possible."""
    if rows <= 16:
        return rows                           # single block; block dim == array dim is legal
    tm = min(tm_max, -(-rows // 2))           # aim for >=2 grid steps (v7x megacore split)
    tm = -(-tm // 16) * 16                    # round up to a multiple of 16
    return min(tm, tm_max)


# --------------------------------------------------------------------------- #
# Public wrapper
# --------------------------------------------------------------------------- #
def binary_kl_div_bregman(x, y, *, w=1.0, eps=1e-12, only_loss=False):
    """Pallas implementation of BinaryKLDivBregman.forward.

    x : logits (any shape), y : target probabilities (same shape).
    Returns kl if only_loss else (kl, grad, hessian) with hessian shape + (1,).
    Outputs are produced in x's dtype (math is done in f32 in-kernel).
    """
    orig_shape = x.shape
    out_dtype = x.dtype
    total = math.prod(orig_shape) if orig_shape else 1

    if total == 0:
        kl = jnp.zeros(orig_shape, out_dtype)
        return kl if only_loss else (kl, kl, kl[..., None])

    if total % _LANES == 0:
        rows, pad = total // _LANES, 0
        x2 = x.reshape(rows, _LANES)          # contiguous reshape: free bitcast, no copy
        y2 = y.reshape(rows, _LANES)
    else:
        rows = -(-total // _LANES)
        pad = rows * _LANES - total           # < 512 elements of tail padding
        x2 = jnp.pad(jnp.ravel(x), (0, pad)).reshape(rows, _LANES)
        y2 = jnp.pad(jnp.ravel(y), (0, pad), constant_values=0.5).reshape(rows, _LANES)

    tm_max, vmem_limit = _device_tuning()
    tm = _pick_tm(rows, tm_max)
    grid = pl.cdiv(rows, tm)                  # partial last block: writes are masked

    spec = pl.BlockSpec((tm, _LANES), lambda i: (i, 0))
    out_sds = jax.ShapeDtypeStruct((rows, _LANES), out_dtype)
    n_out = 1 if only_loss else 3
    # w / eps baked as Python floats (runtime-neutral; pass via scalar prefetch
    # instead if w varies per call and recompiles become a problem).
    kernel = functools.partial(
        _binary_kl_loss_kernel if only_loss else _binary_kl_full_kernel,
        w=float(w), eps=float(eps),
    )

    outs = pl.pallas_call(
        kernel,
        out_shape=tuple([out_sds] * n_out),
        grid_spec=pltpu.PrefetchScalarGridSpec(
            num_scalar_prefetch=0,
            grid=(grid,),
            in_specs=[spec, spec],
            out_specs=[spec] * n_out,
        ),
        compiler_params=pltpu.CompilerParams(
            dimension_semantics=("parallel",),   # splits row blocks across v7x's 2 TCs
            vmem_limit_bytes=vmem_limit,
        ),
    )(x2, y2)

    def unflat(a):
        if pad:
            a = jnp.ravel(a)[:total]
        return a.reshape(orig_shape)

    if only_loss:
        return unflat(outs[0])
    kl, grad, hess = (unflat(o) for o in outs)
    return kl, grad, hess[..., None]            # unsqueeze(-1)


# --------------------------------------------------------------------------- #
# Pure-JAX reference (direct transcription of the PyTorch module)
# --------------------------------------------------------------------------- #
def _reference(x, y, *, w=1.0, eps=1e-12):
    x32 = x.astype(jnp.float32)
    y32 = y.astype(jnp.float32)
    z = w * x32
    s = jnp.clip(jax.nn.sigmoid(z), eps, 1.0 - eps)
    yc = jnp.clip(y32, eps, 1.0 - eps)
    kl = jnp.where(yc > 0, yc * jnp.log(yc / s), 0.0) + jnp.where(
        yc < 1, (1.0 - yc) * jnp.log((1.0 - yc) / (1.0 - s)), 0.0
    )
    grad = w * (s - yc)
    hess = (w * w * s * (1.0 - s))[..., None]
    return kl, grad, hess


if __name__ == "__main__":
    W = 1.5                                     # module "parameter" w

    key = jax.random.PRNGKey(0)
    kx, ky = jax.random.split(key)
    B, C, H, Wd = 2, 4, 16, 16
    x = jax.random.normal(kx, (B, C, H, Wd), dtype=jnp.float32)                   # logits
    y = jax.nn.sigmoid(jax.random.normal(ky, (B, C, H, Wd), dtype=jnp.float32))   # targets

    # f32, nicely divisible shape (zero-copy slab path)
    kl, grad, hess = binary_kl_div_bregman(x, y, w=W)
    kl_only = binary_kl_div_bregman(x, y, w=W, only_loss=True)
    jax.block_until_ready((kl, grad, hess, kl_only))

    kl_r, grad_r, hess_r = _reference(x, y, w=W)
    assert kl.shape == (B, C, H, Wd) and grad.shape == (B, C, H, Wd)
    assert hess.shape == (B, C, H, Wd, 1)
    assert jnp.allclose(kl, kl_r, atol=1e-5, rtol=1e-5)
    assert jnp.allclose(grad, grad_r, atol=1e-5, rtol=1e-5)
    assert jnp.allclose(hess, hess_r, atol=1e-5, rtol=1e-5)
    assert jnp.allclose(kl_only, kl_r, atol=1e-5, rtol=1e-5)

    # Ragged shape: exercises the small tail-pad + partial-block path.
    x_odd = jax.random.normal(kx, (3, 7, 5), dtype=jnp.float32)
    y_odd = jax.nn.sigmoid(jax.random.normal(ky, (3, 7, 5), dtype=jnp.float32))
    kl_o, grad_o, hess_o = binary_kl_div_bregman(x_odd, y_odd, w=W)
    jax.block_until_ready((kl_o, grad_o, hess_o))
    kl_or, grad_or, hess_or = _reference(x_odd, y_odd, w=W)
    assert hess_o.shape == (3, 7, 5, 1)
    assert jnp.allclose(kl_o, kl_or, atol=1e-5, rtol=1e-5)
    assert jnp.allclose(grad_o, grad_or, atol=1e-5, rtol=1e-5)
    assert jnp.allclose(hess_o, hess_or, atol=1e-5, rtol=1e-5)

    # bf16 I/O path: kernel reads/writes bf16 (half the DMA traffic), math in f32.
    x_bf = x.astype(jnp.bfloat16)
    y_bf = y.astype(jnp.bfloat16)
    kl_b, grad_b, hess_b = binary_kl_div_bregman(x_bf, y_bf, w=W)
    jax.block_until_ready((kl_b, grad_b, hess_b))
    kl_br, grad_br, hess_br = _reference(x_bf, y_bf, w=W)
    assert kl_b.dtype == jnp.bfloat16 and grad_b.dtype == jnp.bfloat16
    assert jnp.allclose(kl_b.astype(jnp.float32), kl_br, atol=2e-2, rtol=2e-2)
    assert jnp.allclose(grad_b.astype(jnp.float32), grad_br, atol=2e-2, rtol=2e-2)
    assert jnp.allclose(hess_b.astype(jnp.float32), hess_br, atol=2e-2, rtol=2e-2)

    print("KERNEL_OK")
</pallas_src>

<mosaic_0001>
module attributes {stable_mosaic.version = 11 : i64} {
  func.func @_binary_kl_full_kernel(%arg0: i32, %arg1: memref<4x512xf32, #tpu.memory_space<vmem>>, %arg2: memref<4x512xf32, #tpu.memory_space<vmem>>, %arg3: memref<4x512xf32, #tpu.memory_space<vmem>>, %arg4: memref<4x512xf32, #tpu.memory_space<vmem>>, %arg5: memref<4x512xf32, #tpu.memory_space<vmem>>) attributes {dimension_semantics = [#tpu.dimension_semantics<parallel>], iteration_bounds = array<i64: 1>, scalar_prefetch = 0 : i64, scratch_operands = 0 : i64, tpu.core_type = #tpu.core_type<tc>, window_params = [{transform_indices = @transform_0, window_bounds = array<i64: 4, 512>}, {transform_indices = @transform_1, window_bounds = array<i64: 4, 512>}, {transform_indices = @transform_2, window_bounds = array<i64: 4, 512>}, {transform_indices = @transform_3, window_bounds = array<i64: 4, 512>}, {transform_indices = @transform_4, window_bounds = array<i64: 4, 512>}]} {
    %c0 = arith.constant 0 : index
    %c0_0 = arith.constant 0 : index
    %0 = vector.load %arg1[%c0, %c0_0] : memref<4x512xf32, #tpu.memory_space<vmem>>, vector<4x512xf32>
    %c0_1 = arith.constant 0 : index
    %c0_2 = arith.constant 0 : index
    %1 = vector.load %arg2[%c0_1, %c0_2] : memref<4x512xf32, #tpu.memory_space<vmem>>, vector<4x512xf32>
    %cst = arith.constant 9.99999996E-13 : f32
    %cst_3 = arith.constant 1.000000e+00 : f32
    %2 = vector.broadcast %cst : f32 to vector<4x512xf32>
    %3 = arith.maximumf %2, %1 : vector<4x512xf32>
    %4 = vector.broadcast %cst_3 : f32 to vector<4x512xf32>
    %5 = arith.minimumf %4, %3 : vector<4x512xf32>
    %cst_4 = arith.constant 1.500000e+00 : f32
    %6 = vector.broadcast %cst_4 : f32 to vector<4x512xf32>
    %7 = arith.mulf %6, %0 : vector<4x512xf32>
    %8 = math.absf %7 : vector<4x512xf32>
    %cst_5 = arith.constant 0.000000e+00 : f32
    %9 = vector.broadcast %cst_5 : f32 to vector<4x512xf32>
    %10 = arith.subf %9, %8 : vector<4x512xf32>
    %11 = math.exp %10 : vector<4x512xf32>
    %cst_6 = arith.constant 1.000000e+00 : f32
    %12 = vector.broadcast %cst_6 : f32 to vector<4x512xf32>
    %13 = arith.addf %12, %11 : vector<4x512xf32>
    %14 = math.log %13 : vector<4x512xf32>
    %cst_7 = arith.constant 0.000000e+00 : f32
    %15 = vector.broadcast %cst_7 : f32 to vector<4x512xf32>
    %16 = arith.subf %15, %7 : vector<4x512xf32>
    %cst_8 = arith.constant 0.000000e+00 : f32
    %17 = vector.broadcast %cst_8 : f32 to vector<4x512xf32>
    %18 = arith.maximumf %16, %17 : vector<4x512xf32>
    %19 = arith.addf %14, %18 : vector<4x512xf32>
    %20 = arith.addf %19, %7 : vector<4x512xf32>
    %cst_9 = arith.constant 0.000000e+00 : f32
    %21 = vector.broadcast %cst_9 : f32 to vector<4x512xf32>
    %22 = arith.subf %21, %19 : vector<4x512xf32>
    %cst_10 = arith.constant -27.6310215 : f32
    %23 = vector.broadcast %cst_10 : f32 to vector<4x512xf32>
    %24 = arith.maximumf %22, %23 : vector<4x512xf32>
    %cst_11 = arith.constant 0.000000e+00 : f32
    %25 = vector.broadcast %cst_11 : f32 to vector<4x512xf32>
    %26 = arith.subf %25, %20 : vector<4x512xf32>
    %cst_12 = arith.constant -27.6310215 : f32
    %27 = vector.broadcast %cst_12 : f32 to vector<4x512xf32>
    %28 = arith.maximumf %26, %27 : vector<4x512xf32>
    %29 = math.log %5 : vector<4x512xf32>
    %30 = arith.subf %29, %24 : vector<4x512xf32>
    %31 = arith.mulf %5, %30 : vector<4x512xf32>
    %cst_13 = arith.constant 1.000000e+00 : f32
    %32 = vector.broadcast %cst_13 : f32 to vector<4x512xf32>
    %33 = arith.cmpf olt, %5, %32 : vector<4x512xf32>
    %cst_14 = arith.constant 1.000000e+00 : f32
    %34 = vector.broadcast %cst_14 : f32 to vector<4x512xf32>
    %35 = arith.subf %34, %5 : vector<4x512xf32>
    %cst_15 = arith.constant 1.000000e+00 : f32
    %36 = vector.broadcast %cst_15 : f32 to vector<4x512xf32>
    %37 = arith.subf %36, %5 : vector<4x512xf32>
    %38 = math.log %37 : vector<4x512xf32>
    %39 = arith.subf %38, %28 : vector<4x512xf32>
    %40 = arith.mulf %35, %39 : vector<4x512xf32>
    %cst_16 = arith.constant 0.000000e+00 : f32
    %41 = vector.broadcast %cst_16 : f32 to vector<4x512xf32>
    %42 = arith.select %33, %40, %41 : vector<4x512xi1>, vector<4x512xf32>
    %43 = arith.addf %31, %42 : vector<4x512xf32>
    %cst_17 = arith.constant 1.000000e+00 : f32
    %44 = vector.broadcast %cst_17 : f32 to vector<4x512xf32>
    %45 = arith.addf %44, %11 : vector<4x512xf32>
    %cst_18 = arith.constant 1.000000e+00 : f32
    %46 = vector.broadcast %cst_18 : f32 to vector<4x512xf32>
    %47 = arith.divf %46, %45 : vector<4x512xf32>
    %cst_19 = arith.constant 0.000000e+00 : f32
    %48 = vector.broadcast %cst_19 : f32 to vector<4x512xf32>
    %49 = arith.cmpf oge, %7, %48 : vector<4x512xf32>
    %cst_20 = arith.constant 1.000000e+00 : f32
    %50 = vector.broadcast %cst_20 : f32 to vector<4x512xf32>
    %51 = arith.select %49, %50, %11 : vector<4x512xi1>, vector<4x512xf32>
    %52 = arith.mulf %51, %47 : vector<4x512xf32>
    %cst_21 = arith.constant 9.99999996E-13 : f32
    %cst_22 = arith.constant 1.000000e+00 : f32
    %53 = vector.broadcast %cst_21 : f32 to vector<4x512xf32>
    %54 = arith.maximumf %53, %52 : vector<4x512xf32>
    %55 = vector.broadcast %cst_22 : f32 to vector<4x512xf32>
    %56 = arith.minimumf %55, %54 : vector<4x512xf32>
    %c0_23 = arith.constant 0 : index
    %c0_24 = arith.constant 0 : index
    %57 = vector.load %arg3[%c0_23, %c0_24] : memref<4x512xf32, #tpu.memory_space<vmem>>, vector<4x512xf32>
    tpu.vector_store %arg3[%c0_23, %c0_24], %43 {strides = array<i32>} : memref<4x512xf32, #tpu.memory_space<vmem>>, vector<4x512xf32>,
    %58 = arith.subf %56, %5 : vector<4x512xf32>
    %cst_25 = arith.constant 1.500000e+00 : f32
    %59 = vector.broadcast %cst_25 : f32 to vector<4x512xf32>
    %60 = arith.mulf %59, %58 : vector<4x512xf32>
    %c0_26 = arith.constant 0 : index
    %c0_27 = arith.constant 0 : index
    %61 = vector.load %arg4[%c0_26, %c0_27] : memref<4x512xf32, #tpu.memory_space<vmem>>, vector<4x512xf32>
    tpu.vector_store %arg4[%c0_26, %c0_27], %60 {strides = array<i32>} : memref<4x512xf32, #tpu.memory_space<vmem>>, vector<4x512xf32>,
    %62 = arith.mulf %11, %47 : vector<4x512xf32>
    %63 = arith.mulf %62, %47 : vector<4x512xf32>
    %cst_28 = arith.constant 2.250000e+00 : f32
    %64 = vector.broadcast %cst_28 : f32 to vector<4x512xf32>
    %65 = arith.mulf %64, %63 : vector<4x512xf32>
    %c0_29 = arith.constant 0 : index
    %c0_30 = arith.constant 0 : index
    %66 = vector.load %arg5[%c0_29, %c0_30] : memref<4x512xf32, #tpu.memory_space<vmem>>, vector<4x512xf32>
    tpu.vector_store %arg5[%c0_29, %c0_30], %65 {strides = array<i32>} : memref<4x512xf32, #tpu.memory_space<vmem>>, vector<4x512xf32>,
    return
  }
  func.func @transform_0(%arg0: i32) -> (i32, i32) {
    %c0_i32 = arith.constant 0 : i32
    %c0_i32_0 = arith.constant 0 : i32
    return %arg0, %c0_i32 : i32, i32
  }
  func.func @transform_1(%arg0: i32) -> (i32, i32) {
    %c0_i32 = arith.constant 0 : i32
    %c0_i32_0 = arith.constant 0 : i32
    return %arg0, %c0_i32 : i32, i32
  }
  func.func @transform_2(%arg0: i32) -> (i32, i32) {
    %c0_i32 = arith.constant 0 : i32
    %c0_i32_0 = arith.constant 0 : i32
    return %arg0, %c0_i32 : i32, i32
  }
  func.func @transform_3(%arg0: i32) -> (i32, i32) {
    %c0_i32 = arith.constant 0 : i32
    %c0_i32_0 = arith.constant 0 : i32
    return %arg0, %c0_i32 : i32, i32
  }
  func.func @transform_4(%arg0: i32) -> (i32, i32) {
    %c0_i32 = arith.constant 0 : i32
    %c0_i32_0 = arith.constant 0 : i32
    return %arg0, %c0_i32 : i32, i32
  }
}

</mosaic_0001>

<llo_original>
// kernel: tpu_custom_call.1
$region0: #{tpu_custom_call.1}
  #allocation0 [shape = 'u32[]', space=smem, size = 0x4, offset = 0x4, fixed_abs, tag = 'smem constant byte address 0x4 - core index']
  #allocation1 [shape = 'u32[144,128]{1,0:T(1,128)}', space=vmem, size = 0x12000, scoped, tag = 'internal scratch']
  %s0 = inlined_call_operand.hbm [shape: f32[4,512], index: 0, kind: input, shape index: {}]
  %s1 = inlined_call_operand.hbm [shape: f32[4,512], index: 1, kind: input, shape index: {}]
  %s2 = inlined_call_operand.hbm [shape: f32[4,512], index: 2, kind: output, shape index: {0}]
  %s3 = inlined_call_operand.hbm [shape: f32[4,512], index: 3, kind: output, shape index: {1}]
  %s4 = inlined_call_operand.hbm [shape: f32[4,512], index: 4, kind: output, shape index: {2}]
  %5 = xla_tuple %s2, %s3, %s4
  %s6 = sld [smem:[#allocation0]]
  $region42: #{tpu_custom_call.1} parent=0
    _
  %s8 = ssub.s32 1, %s6
  %s9 = scalar_select 0, %s8, %s6
  $region1: #{tpu_custom_call.1} parent=0
    #allocation2 [shape = 'u8[8192]{0}', space=vmem, size = 0x2000, scoped, tag = 'input window, operand 0, single buffered']
    #allocation3 [shape = 's32[1]{0}', space=sflag, size = 0x4, scoped, tag = 'scoped memory for tpu_custom_call.1']
    #allocation4 [shape = 's32[1]{0}', space=sflag, size = 0x4, scoped, tag = 'scoped memory for tpu_custom_call.1']
    #allocation5 [shape = 'u8[8192]{0}', space=vmem, size = 0x2000, scoped, tag = 'input window, operand 1, single buffered']
    #allocation6 [shape = 's32[1]{0}', space=sflag, size = 0x4, scoped, tag = 'scoped memory for tpu_custom_call.1']
    #allocation7 [shape = 'u8[8192]{0}', space=vmem, size = 0x2000, scoped, tag = 'output window, operand 0, single buffered']
    #allocation8 [shape = 'u8[8192]{0}', space=vmem, size = 0x2000, scoped, tag = 'output window, operand 1, single buffered']
    #allocation9 [shape = 's32[1]{0}', space=sflag, size = 0x4, scoped, tag = 'scoped memory for tpu_custom_call.1']
    #allocation10 [shape = 'u8[8192]{0}', space=vmem, size = 0x2000, scoped, tag = 'output window, operand 2, single buffered']
    %10 = vsyncpa [#allocation3], 0
    %11 = vsyncpa [#allocation6], 0
    %12 = vsyncpa [#allocation4], 0
    %13 = vsyncpa [#allocation9], 0
    // Predicated region
    $region2: #{tpu_custom_call.1} parent=1 // pred_check
      _
    $region3: #{tpu_custom_call.1} parent=1 // pred_check_branch
      %15 = sbr.rel (0) target = $region5
    $region4: #{tpu_custom_call.1} parent=1 // pred_region
      %s17 = ssub.s32 256, 256
      %18 = vsyncadd [#allocation3], %s17
      %s20 = sshll.u32 [#allocation2], 4
      %s21 = int_to_ptr.vmem [resolvable:$true] %s20
      %23 = dma.hbm_to_vmem [thread:$0]  %s0, 256, %s21, [#allocation3]
    $region5: #{tpu_custom_call.1} parent=1 // pred_fallthru
      _
    // Predicated region
    $region6: #{tpu_custom_call.1} parent=1 // pred_check
      _
    $region7: #{tpu_custom_call.1} parent=1 // pred_check_branch
      %25 = sbr.rel (0) target = $region9
    $region8: #{tpu_custom_call.1} parent=1 // pred_region
      %s27 = ssub.s32 256, 256
      %28 = vsyncadd [#allocation6], %s27
      %s30 = sshll.u32 [#allocation5], 4
      %s31 = int_to_ptr.vmem [resolvable:$true] %s30
      %33 = dma.hbm_to_vmem [thread:$0]  %s1, 256, %s31, [#allocation6]
    $region9: #{tpu_custom_call.1} parent=1 // pred_fallthru
      _
    // Predicated region
    $region10: #{tpu_custom_call.1} parent=1 // pred_check
      _
    $region11: #{tpu_custom_call.1} parent=1 // pred_check_branch
      %35 = sbr.rel (0) target = $region13
    $region12: #{tpu_custom_call.1} parent=1 // pred_region
      %36 = dma.done [#allocation3], 256
    $region13: #{tpu_custom_call.1} parent=1 // pred_fallthru
      _
    // Predicated region
    $region14: #{tpu_custom_call.1} parent=1 // pred_check
      _
    $region15: #{tpu_custom_call.1} parent=1 // pred_check_branch
      %38 = sbr.rel (0) target = $region17
    $region16: #{tpu_custom_call.1} parent=1 // pred_region
      %39 = dma.done [#allocation6], 256
    $region17: #{tpu_custom_call.1} parent=1 // pred_fallthru
      _
    %v40 = vld [vmem:[#allocation2] sm:$0xff]
    %v41 = vld [vmem:[#allocation2 + $0x8] sm:$0xff]
    %v42 = vld [vmem:[#allocation5] sm:$0xff]
    %v43 = vld [vmem:[#allocation5 + $0x8] sm:$0xff]
    %v44 = vmax.f32 %v42, 1e-12
    %v45 = vmax.f32 %v43, 1e-12
    %v46 = vmin.f32 %v44, 1.0
    %v47 = vmin.f32 %v45, 1.0
    %v48 = vmul.f32 %v40, 1.5
    %v49 = vmul.f32 %v41, 1.5
    %v50 = vand.u32 2147483647, %v48
    %v51 = vand.u32 2147483647, %v49
    %v52 = vsub.f32 0.0, %v50
    %v53 = vsub.f32 0.0, %v51
    %v54 = vmul.f32 %v52, 1.442695
    %v55 = vpow.pop %v54
    %v56 = vmul.f32 %v53, 1.442695
    %v57 = vpow.pop %v56
    %v58 = vadd.f32 %v55, 1.0
    %v59 = vadd.f32 %v57, 1.0
    %v60 = vlog2.pop %v58
    %v61 = vmul.f32 %v60, 0.6931472
    %v62 = vlog2.pop %v59
    %v63 = vmul.f32 %v62, 0.6931472
    %v64 = vsub.f32 0.0, %v48
    %v65 = vsub.f32 0.0, %v49
    %v66 = vmax.f32 %v64, 0.0
    %v67 = vmax.f32 %v65, 0.0
    %v68 = vadd.f32 %v61, %v66
    %v69 = vadd.f32 %v63, %v67
    %v70 = vadd.f32 %v68, %v48
    %v71 = vadd.f32 %v69, %v49
    %v72 = vsub.f32 0.0, %v68
    %v73 = vsub.f32 0.0, %v69
    %v74 = vmax.f32 %v72, -27.631021
    %v75 = vmax.f32 %v73, -27.631021
    %v76 = vsub.f32 0.0, %v70
    %v77 = vsub.f32 0.0, %v71
    %v78 = vmax.f32 %v76, -27.631021
    %v79 = vmax.f32 %v77, -27.631021
    %v80 = vlog2.pop %v46
    %v81 = vmul.f32 %v80, 0.6931472
    %v82 = vlog2.pop %v47
    %v83 = vmul.f32 %v82, 0.6931472
    %v84 = vsub.f32 %v81, %v74
    %v85 = vsub.f32 %v83, %v75
    %v86 = vmul.f32 %v46, %v84
    %v87 = vmul.f32 %v47, %v85
    %vm88 = vcmp.lt.f32.partialorder %v46, 1.0
    %vm89 = vcmp.lt.f32.partialorder %v47, 1.0
    %v90 = vsub.f32 1.0, %v46
    %v91 = vsub.f32 1.0, %v47
    %v92 = vlog2.pop %v90
    %v93 = vmul.f32 %v92, 0.6931472
    %v94 = vlog2.pop %v91
    %v95 = vmul.f32 %v94, 0.6931472
    %v96 = vsub.f32 %v93, %v78
    %v97 = vsub.f32 %v95, %v79
    %v98 = vmul.f32 %v90, %v96
    %v99 = vmul.f32 %v91, %v97
    %v100 = vsel %vm88, %v98, 0.0
    %v101 = vsel %vm89, %v99, 0.0
    %v102 = vadd.f32 %v86, %v100
    %v103 = vadd.f32 %v87, %v101
    %v104 = vrcp.pop %v58
    %v105 = vmul.f32 1.0, %v104
    %v106 = vrcp.pop %v59
    %v107 = vmul.f32 1.0, %v106
    %vm108 = vcmp.ge.f32.partialorder %v48, 0.0
    %vm109 = vcmp.ge.f32.partialorder %v49, 0.0
    %v110 = vsel %vm108, 1.0, %v55
    %v111 = vsel %vm109, 1.0, %v57
    %v112 = vmul.f32 %v110, %v105
    %v113 = vmul.f32 %v111, %v107
    %v114 = vmax.f32 %v112, 1e-12
    %v115 = vmax.f32 %v113, 1e-12
    %v116 = vmin.f32 %v114, 1.0
    %v117 = vmin.f32 %v115, 1.0
    %118 = vst [vmem:[#allocation7] sm:$0xff] %v102
    %119 = vst [vmem:[#allocation7 + $0x8] sm:$0xff] %v103
    %v120 = vsub.f32 %v116, %v46
    %v121 = vsub.f32 %v117, %v47
    %v122 = vmul.f32 %v120, 1.5
    %v123 = vmul.f32 %v121, 1.5
    %124 = vst [vmem:[#allocation8] sm:$0xff] %v122
    %125 = vst [vmem:[#allocation8 + $0x8] sm:$0xff] %v123
    %v126 = vmul.f32 %v55, %v105
    %v127 = vmul.f32 %v57, %v107
    %v128 = vmul.f32 %v126, %v105
    %v129 = vmul.f32 %v127, %v107
    %v130 = vmul.f32 %v128, 2.25
    %v131 = vmul.f32 %v129, 2.25
    %132 = vst [vmem:[#allocation10] sm:$0xff] %v130
    %133 = vst [vmem:[#allocation10 + $0x8] sm:$0xff] %v131
    // Predicated region
    $region18: #{tpu_custom_call.1} parent=1 // pred_check
      _
    $region19: #{tpu_custom_call.1} parent=1 // pred_check_branch
      %135 = sbr.rel (0) target = $region21
    $region20: #{tpu_custom_call.1} parent=1 // pred_region
      %s137 = ssub.s32 256, 256
      %138 = vsyncadd [#allocation4], %s137
      %s140 = sshll.u32 [#allocation7], 4
      %s141 = int_to_ptr.vmem [resolvable:$true] %s140
      %143 = dma.vmem_to_hbm [thread:$0]  %s141, 256, %s2, [#allocation4]
    $region21: #{tpu_custom_call.1} parent=1 // pred_fallthru
      _
    // Predicated region
    $region22: #{tpu_custom_call.1} parent=1 // pred_check
      _
    $region23: #{tpu_custom_call.1} parent=1 // pred_check_branch
      %145 = sbr.rel (0) target = $region25
    $region24: #{tpu_custom_call.1} parent=1 // pred_region
      %s147 = ssub.s32 256, 256
      %148 = vsyncadd [#allocation9], %s147
      %s150 = sshll.u32 [#allocation8], 4
      %s151 = int_to_ptr.vmem [resolvable:$true] %s150
      %153 = dma.vmem_to_hbm [thread:$0]  %s151, 256, %s3, [#allocation9]
    $region25: #{tpu_custom_call.1} parent=1 // pred_fallthru
      _
    // Predicated region
    $region26: #{tpu_custom_call.1} parent=1 // pred_check
      _
    $region27: #{tpu_custom_call.1} parent=1 // pred_check_branch
      %155 = sbr.rel (0) target = $region29
    $region28: #{tpu_custom_call.1} parent=1 // pred_region
      %s157 = ssub.s32 256, 256
      %158 = vsyncadd [#allocation9], %s157
      %s160 = sshll.u32 [#allocation10], 4
      %s161 = int_to_ptr.vmem [resolvable:$true] %s160
      %163 = dma.vmem_to_hbm [thread:$0]  %s161, 256, %s4, [#allocation9]
    $region29: #{tpu_custom_call.1} parent=1 // pred_fallthru
      _
    // Predicated region
    $region30: #{tpu_custom_call.1} parent=1 // pred_check
      _
    $region31: #{tpu_custom_call.1} parent=1 // pred_check_branch
      %165 = sbr.rel (0) target = $region33
    $region32: #{tpu_custom_call.1} parent=1 // pred_region
      %166 = dma.done [#allocation4], 256
    $region33: #{tpu_custom_call.1} parent=1 // pred_fallthru
      _
    // Predicated region
    $region34: #{tpu_custom_call.1} parent=1 // pred_check
      _
    $region35: #{tpu_custom_call.1} parent=1 // pred_check_branch
      %168 = sbr.rel (0) target = $region37
    $region36: #{tpu_custom_call.1} parent=1 // pred_region
      %169 = dma.done [#allocation9], 256
    $region37: #{tpu_custom_call.1} parent=1 // pred_fallthru
      _
    // Predicated region
    $region38: #{tpu_custom_call.1} parent=1 // pred_check
      _
    $region39: #{tpu_custom_call.1} parent=1 // pred_check_branch
      %171 = sbr.rel (0) target = $region41
    $region40: #{tpu_custom_call.1} parent=1 // pred_region
      %172 = dma.done [#allocation9], 256
    $region41: #{tpu_custom_call.1} parent=1 // pred_fallthru
      _
    %173 = vsyncpa [#allocation3], 1
    %174 = vsyncpa [#allocation6], 1
    %175 = vsyncpa [#allocation4], 1
    %176 = vsyncpa [#allocation9], 1

</llo_original>
